<compile_context>
chip_gen: v7x
topology: tpu7x:2x2x1
jax: 0.10.0
libtpu: 0.0.40
codegen_flags: <defaults>
</compile_context>

<pallas_src>
import functools

import numpy as np
import jax
import jax.numpy as jnp
from jax import lax
from jax.experimental import pallas as pl
from jax.experimental.pallas import tpu as pltpu


def _round_up(x, m):
    return ((x + m - 1) // m) * m


def _gen_en_kernel(cre_ref, cim_ref, eyre_ref, eyim_ref,
                   ore_ref, oim_ref, tre_ref, tim_ref,
                   slab_re, slab_im, carry_re, carry_im,
                   *, modes, nseg, res, W):
    """One grid step = one batch of W consecutive waveguides.

    cre_ref/cim_ref   : [W, modes]            coeff = eta * U (real / imag)
    eyre_ref/eyim_ref : [modes, W, nseg*res]  lane-dense mode fields (real / imag)
    ore_ref/oim_ref   : [W, res]              this batch's finished output rows (streamed)
    tre_ref/tim_ref   : [nseg-1, res]         final tail rows (resident; valid after last step)
    slab_re/slab_im   : [W+nseg-1, res]       per-batch overlap-add scratch
    carry_re/carry_im : [nseg-1, res]         halo carried into the next batch
    """
    halo = nseg - 1
    b = pl.program_id(0)

    @pl.when(b == 0)
    def _():
        carry_re[...] = jnp.zeros_like(carry_re)
        carry_im[...] = jnp.zeros_like(carry_im)

    # Seed the slab: previous batch's halo in the head rows, zeros elsewhere.
    slab_re[...] = jnp.zeros_like(slab_re)
    slab_im[...] = jnp.zeros_like(slab_im)
    slab_re[0:halo, :] = carry_re[...]
    slab_im[0:halo, :] = carry_im[...]

    # Complex MAC over modes + local overlap-add, one (mode, segment) window at a
    # time: no full [W, nseg, res] contribution tensor is ever materialized and the
    # only RMWs are static-offset updates on the small VMEM slab.
    cre_all = cre_ref[...]                   # [W, modes]
    cim_all = cim_ref[...]
    for m in range(modes):
        cr = cre_all[:, m:m + 1]             # [W, 1] -> broadcast over lanes
        ci = cim_all[:, m:m + 1]
        er_full = eyre_ref[m]                # [W, nseg*res] lane-dense plane
        ei_full = eyim_ref[m]
        for s in range(nseg):
            lo = s * res
            er = er_full[:, lo:lo + res]     # [W, res]
            ei = ei_full[:, lo:lo + res]
            slab_re[s:s + W, :] = slab_re[s:s + W, :] + (cr * er - ci * ei)
            slab_im[s:s + W, :] = slab_im[s:s + W, :] + (cr * ei + ci * er)

    # Rows [0, W) are finished -> stream them out; rows [W, W+halo) carry forward.
    ore_ref[...] = slab_re[0:W, :]
    oim_ref[...] = slab_im[0:W, :]
    carry_re[...] = slab_re[W:W + halo, :]
    carry_im[...] = slab_im[W:W + halo, :]
    # Resident tail output: after the last grid step this holds rows [N_pad, N_pad+halo).
    tre_ref[...] = slab_re[W:W + halo, :]
    tim_ref[...] = slab_im[W:W + halo, :]


def gen_en_forward(hs, U, neff, Ey, *, modes, res, N, n0, Knn, wg_per_step=None):
    """JAX/Pallas equivalent of gen_En.forward. Returns complex64 of shape [N*res]."""
    del hs  # hs is reshaped but never used in the reference forward

    nseg = 2 * (Knn + 1)
    halo = nseg - 1                         # = 2*Knn + 1
    ey_size = nseg * res
    assert Ey.shape == (N, modes, ey_size)
    assert U.shape == (N, modes) and neff.shape == (N, modes)

    # ---- pick W = waveguides per grid step (multiple of 8, VMEM-budget bounded) ----
    if wg_per_step is None:
        lane_pad = _round_up(ey_size, 128)
        per_wg_bytes = 2 * 2 * modes * lane_pad * 4   # re/im x double-buffer x modes x f32
        W = max(8, min(128, (8 << 20) // max(per_wg_bytes, 1)))
    else:
        W = max(1, int(wg_per_step))
    W = _round_up(W, 8)
    W = min(W, _round_up(N, 8))
    if (N + W - 1) // W > 1 and W < halo:
        W = _round_up(halo, 8)              # keep the carried halo inside the next block
    num_batches = (N + W - 1) // W
    N_pad = num_batches * W

    # ---- wrapper prep: coeff = eta * U; split complex into f32 planes ----
    neff_f = jnp.asarray(neff, jnp.float32)
    eta = neff_f * n0 / (neff_f + n0)                          # [N, modes]
    c_re = eta * jnp.real(U).astype(jnp.float32)               # [N, modes]
    c_im = eta * jnp.imag(U).astype(jnp.float32)

    # [modes, N, nseg*res]: one fused real()/imag()+transpose pass per plane; the
    # segment axis stays folded into the lane axis so Ey blocks are lane-dense.
    # TODO(synk): optionally stream Ey as bf16 (f32 accumulate) for ~2x DMA saving;
    # kept f32 to preserve the torch complex64 numerics.
    ey_re = jnp.transpose(jnp.real(Ey).astype(jnp.float32), (1, 0, 2))
    ey_im = jnp.transpose(jnp.imag(Ey).astype(jnp.float32), (1, 0, 2))

    if N_pad != N:
        pad_n = N_pad - N
        c_re = jnp.pad(c_re, ((0, pad_n), (0, 0)))
        c_im = jnp.pad(c_im, ((0, pad_n), (0, 0)))
        ey_re = jnp.pad(ey_re, ((0, 0), (0, pad_n), (0, 0)))
        ey_im = jnp.pad(ey_im, ((0, 0), (0, pad_n), (0, 0)))

    kernel = functools.partial(_gen_en_kernel, modes=modes, nseg=nseg, res=res, W=W)

    coeff_spec = pl.BlockSpec((W, modes), lambda b: (b, 0))
    ey_spec = pl.BlockSpec((modes, W, ey_size), lambda b: (0, b, 0))
    out_spec = pl.BlockSpec((W, res), lambda b: (b, 0))
    tail_spec = pl.BlockSpec((halo, res), lambda b: (0, 0))

    out_re, out_im, tail_re, tail_im = pl.pallas_call(
        kernel,
        out_shape=(jax.ShapeDtypeStruct((N_pad, res), jnp.float32),
                   jax.ShapeDtypeStruct((N_pad, res), jnp.float32),
                   jax.ShapeDtypeStruct((halo, res), jnp.float32),
                   jax.ShapeDtypeStruct((halo, res), jnp.float32)),
        grid=(num_batches,),
        in_specs=[coeff_spec, coeff_spec, ey_spec, ey_spec],
        out_specs=(out_spec, out_spec, tail_spec, tail_spec),
        scratch_shapes=[pltpu.VMEM((W + halo, res), jnp.float32),
                        pltpu.VMEM((W + halo, res), jnp.float32),
                        pltpu.VMEM((halo, res), jnp.float32),
                        pltpu.VMEM((halo, res), jnp.float32)],
        compiler_params=pltpu.CompilerParams(
            # "arbitrary": consecutive batches are chained through the halo carry.
            dimension_semantics=("arbitrary",)),
    )(c_re, c_im, ey_re, ey_im)

    # Assemble En_full (rows [0, N_pad + halo)) and crop, matching the reference.
    en_re = jnp.concatenate([out_re.reshape(-1), tail_re.reshape(-1)])
    en_im = jnp.concatenate([out_im.reshape(-1), tail_im.reshape(-1)])
    start = (2 * Knn + 1) * res // 2
    end = start + N * res
    return lax.complex(en_re[start:end], en_im[start:end])


def _reference_numpy(hs, U, neff, Ey, *, modes, res, N, n0, Knn):
    """Direct numpy transcription of the PyTorch forward, for validation."""
    del hs
    total_size = (N + 2 * Knn + 1) * res
    eta = neff * n0 / (neff + n0)
    Eyw = eta[:, :, None] * Ey * U[:, :, None]
    En = np.zeros((total_size,), np.complex64)
    for i in range(N):
        for m in range(modes):
            center = i * res + (Knn + 1) * res
            radius = (Knn + 1) * res
            En[center - radius:center + radius] += Eyw[i, m].astype(np.complex64)
    start = (2 * Knn + 1) * res // 2
    end = start + N * res
    return En[start:end]


if __name__ == "__main__":
    modes, res, n0, Knn = 2, 16, 1.0, 2
    C_EPSILON, dx = 1.0, 0.1  # unused by forward, kept for fidelity
    ey_size = 2 * (Knn + 1) * res  # 96

    def make_inputs(N):
        key = jax.random.PRNGKey(0)
        k1, k2, k3, k4, k5, k6 = jax.random.split(key, 6)
        hs = jax.random.uniform(k1, (N,), jnp.float32, 0.1, 0.3)
        neff = jax.random.uniform(k2, (N, modes), jnp.float32, 1.5, 2.5)
        U = (jax.random.normal(k3, (N, modes), jnp.float32)
             + 1j * jax.random.normal(k4, (N, modes), jnp.float32)).astype(jnp.complex64)
        Ey = (jax.random.normal(k5, (N, modes, ey_size), jnp.float32)
              + 1j * jax.random.normal(k6, (N, modes, ey_size), jnp.float32)
              ).astype(jnp.complex64)
        return hs, U, neff, Ey

    # Case 1: small single-batch path (grid=(1,)).
    N = 8
    hs, U, neff, Ey = make_inputs(N)
    ref = _reference_numpy(np.asarray(hs), np.asarray(U), np.asarray(neff),
                           np.asarray(Ey), modes=modes, res=res, N=N, n0=n0, Knn=Knn)
    en = jax.block_until_ready(
        gen_en_forward(hs, U, neff, Ey, modes=modes, res=res, N=N, n0=n0, Knn=Knn))
    assert en.shape == (N * res,) and en.dtype == jnp.complex64
    np.testing.assert_allclose(np.asarray(en), ref, rtol=1e-4, atol=1e-4)

    # Case 2: multi-batch path exercising the halo carry + ragged-tail padding
    # (N=20, W=8 -> grid=(3,), 4 padded waveguides).
    N2 = 20
    hs2, U2, neff2, Ey2 = make_inputs(N2)
    ref2 = _reference_numpy(np.asarray(hs2), np.asarray(U2), np.asarray(neff2),
                            np.asarray(Ey2), modes=modes, res=res, N=N2, n0=n0, Knn=Knn)
    en2 = jax.block_until_ready(
        gen_en_forward(hs2, U2, neff2, Ey2, modes=modes, res=res, N=N2, n0=n0,
                       Knn=Knn, wg_per_step=8))
    assert en2.shape == (N2 * res,) and en2.dtype == jnp.complex64
    np.testing.assert_allclose(np.asarray(en2), ref2, rtol=1e-4, atol=1e-4)

    print("KERNEL_OK")
</pallas_src>

<mosaic_0001>
module attributes {stable_mosaic.version = 11 : i64} {
  func.func @_gen_en_kernel(%arg0: i32, %arg1: memref<8x2xf32, #tpu.memory_space<vmem>>, %arg2: memref<8x2xf32, #tpu.memory_space<vmem>>, %arg3: memref<2x8x96xf32, #tpu.memory_space<vmem>>, %arg4: memref<2x8x96xf32, #tpu.memory_space<vmem>>, %arg5: memref<8x16xf32, #tpu.memory_space<vmem>>, %arg6: memref<8x16xf32, #tpu.memory_space<vmem>>, %arg7: memref<5x16xf32, #tpu.memory_space<vmem>>, %arg8: memref<5x16xf32, #tpu.memory_space<vmem>>, %arg9: memref<13x16xf32, #tpu.memory_space<vmem>>, %arg10: memref<13x16xf32, #tpu.memory_space<vmem>>, %arg11: memref<5x16xf32, #tpu.memory_space<vmem>>, %arg12: memref<5x16xf32, #tpu.memory_space<vmem>>) attributes {dimension_semantics = [#tpu.dimension_semantics<arbitrary>], iteration_bounds = array<i64: 1>, scalar_prefetch = 0 : i64, scratch_operands = 4 : i64, tpu.core_type = #tpu.core_type<tc>, window_params = [{transform_indices = @transform_0, window_bounds = array<i64: 8, 2>}, {transform_indices = @transform_1, window_bounds = array<i64: 8, 2>}, {transform_indices = @transform_2, window_bounds = array<i64: 2, 8, 96>}, {transform_indices = @transform_3, window_bounds = array<i64: 2, 8, 96>}, {transform_indices = @transform_4, window_bounds = array<i64: 8, 16>}, {transform_indices = @transform_5, window_bounds = array<i64: 8, 16>}, {pipeline_mode = #tpu.pipeline_mode<synchronous>, transform_indices = @transform_6, window_bounds = array<i64: 5, 16>}, {pipeline_mode = #tpu.pipeline_mode<synchronous>, transform_indices = @transform_7, window_bounds = array<i64: 5, 16>}]} {
    %c0_i32 = arith.constant 0 : i32
    %0 = arith.cmpi eq, %arg0, %c0_i32 : i32
    %1 = arith.extui %0 : i1 to i32
    %c0_i32_0 = arith.constant 0 : i32
    %2 = arith.cmpi ne, %1, %c0_i32_0 : i32
    scf.if %2 {
      %cst_143 = arith.constant 0.000000e+00 : f32
      %253 = vector.broadcast %cst_143 : f32 to vector<5x16xf32>
      %c0_144 = arith.constant 0 : index
      %c0_145 = arith.constant 0 : index
      %254 = vector.load %arg11[%c0_144, %c0_145] : memref<5x16xf32, #tpu.memory_space<vmem>>, vector<5x16xf32>
      tpu.vector_store %arg11[%c0_144, %c0_145], %253 {strides = array<i32>} : memref<5x16xf32, #tpu.memory_space<vmem>>, vector<5x16xf32>,
      %cst_146 = arith.constant 0.000000e+00 : f32
      %255 = vector.broadcast %cst_146 : f32 to vector<5x16xf32>
      %c0_147 = arith.constant 0 : index
      %c0_148 = arith.constant 0 : index
      %256 = vector.load %arg12[%c0_147, %c0_148] : memref<5x16xf32, #tpu.memory_space<vmem>>, vector<5x16xf32>
      tpu.vector_store %arg12[%c0_147, %c0_148], %255 {strides = array<i32>} : memref<5x16xf32, #tpu.memory_space<vmem>>, vector<5x16xf32>,
    } else {
    }
    %cst = arith.constant 0.000000e+00 : f32
    %3 = vector.broadcast %cst : f32 to vector<13x16xf32>
    %c0 = arith.constant 0 : index
    %c0_1 = arith.constant 0 : index
    %4 = vector.load %arg9[%c0, %c0_1] : memref<13x16xf32, #tpu.memory_space<vmem>>, vector<13x16xf32>
    tpu.vector_store %arg9[%c0, %c0_1], %3 {strides = array<i32>} : memref<13x16xf32, #tpu.memory_space<vmem>>, vector<13x16xf32>,
    %cst_2 = arith.constant 0.000000e+00 : f32
    %5 = vector.broadcast %cst_2 : f32 to vector<13x16xf32>
    %c0_3 = arith.constant 0 : index
    %c0_4 = arith.constant 0 : index
    %6 = vector.load %arg10[%c0_3, %c0_4] : memref<13x16xf32, #tpu.memory_space<vmem>>, vector<13x16xf32>
    tpu.vector_store %arg10[%c0_3, %c0_4], %5 {strides = array<i32>} : memref<13x16xf32, #tpu.memory_space<vmem>>, vector<13x16xf32>,
    %c0_5 = arith.constant 0 : index
    %c0_6 = arith.constant 0 : index
    %7 = vector.load %arg11[%c0_5, %c0_6] : memref<5x16xf32, #tpu.memory_space<vmem>>, vector<5x16xf32>
    %c0_7 = arith.constant 0 : index
    %c0_8 = arith.constant 0 : index
    %8 = vector.load %arg9[%c0_7, %c0_8] : memref<13x16xf32, #tpu.memory_space<vmem>>, vector<5x16xf32>
    tpu.vector_store %arg9[%c0_7, %c0_8], %7 {strides = array<i32>} : memref<13x16xf32, #tpu.memory_space<vmem>>, vector<5x16xf32>,
    %c0_9 = arith.constant 0 : index
    %c0_10 = arith.constant 0 : index
    %9 = vector.load %arg12[%c0_9, %c0_10] : memref<5x16xf32, #tpu.memory_space<vmem>>, vector<5x16xf32>
    %c0_11 = arith.constant 0 : index
    %c0_12 = arith.constant 0 : index
    %10 = vector.load %arg10[%c0_11, %c0_12] : memref<13x16xf32, #tpu.memory_space<vmem>>, vector<5x16xf32>
    tpu.vector_store %arg10[%c0_11, %c0_12], %9 {strides = array<i32>} : memref<13x16xf32, #tpu.memory_space<vmem>>, vector<5x16xf32>,
    %c0_13 = arith.constant 0 : index
    %c0_14 = arith.constant 0 : index
    %11 = vector.load %arg1[%c0_13, %c0_14] : memref<8x2xf32, #tpu.memory_space<vmem>>, vector<8x2xf32>
    %c0_15 = arith.constant 0 : index
    %c0_16 = arith.constant 0 : index
    %12 = vector.load %arg2[%c0_15, %c0_16] : memref<8x2xf32, #tpu.memory_space<vmem>>, vector<8x2xf32>
    %13 = vector.extract_strided_slice %11 {offsets = [0, 0], sizes = [8, 1], strides = [1, 1]} : vector<8x2xf32> to vector<8x1xf32>
    %14 = vector.extract_strided_slice %12 {offsets = [0, 0], sizes = [8, 1], strides = [1, 1]} : vector<8x2xf32> to vector<8x1xf32>
    %c0_17 = arith.constant 0 : index
    %c0_18 = arith.constant 0 : index
    %c0_19 = arith.constant 0 : index
    %15 = vector.load %arg3[%c0_17, %c0_18, %c0_19] : memref<2x8x96xf32, #tpu.memory_space<vmem>>, vector<1x8x96xf32>
    %16 = vector.shape_cast %15 : vector<1x8x96xf32> to vector<8x96xf32>
    %c0_20 = arith.constant 0 : index
    %c0_21 = arith.constant 0 : index
    %c0_22 = arith.constant 0 : index
    %17 = vector.load %arg4[%c0_20, %c0_21, %c0_22] : memref<2x8x96xf32, #tpu.memory_space<vmem>>, vector<1x8x96xf32>
    %18 = vector.shape_cast %17 : vector<1x8x96xf32> to vector<8x96xf32>
    %19 = vector.extract_strided_slice %16 {offsets = [0, 0], sizes = [8, 16], strides = [1, 1]} : vector<8x96xf32> to vector<8x16xf32>
    %20 = vector.extract_strided_slice %18 {offsets = [0, 0], sizes = [8, 16], strides = [1, 1]} : vector<8x96xf32> to vector<8x16xf32>
    %c0_23 = arith.constant 0 : index
    %c0_24 = arith.constant 0 : index
    %21 = vector.load %arg9[%c0_23, %c0_24] : memref<13x16xf32, #tpu.memory_space<vmem>>, vector<8x16xf32>
    %22 = vector.broadcast %13 : vector<8x1xf32> to vector<8x16xf32>
    %23 = arith.mulf %22, %19 : vector<8x16xf32>
    %24 = vector.broadcast %14 : vector<8x1xf32> to vector<8x16xf32>
    %25 = arith.mulf %24, %20 : vector<8x16xf32>
    %26 = arith.subf %23, %25 : vector<8x16xf32>
    %27 = arith.addf %21, %26 : vector<8x16xf32>
    %c0_25 = arith.constant 0 : index
    %c0_26 = arith.constant 0 : index
    %28 = vector.load %arg9[%c0_25, %c0_26] : memref<13x16xf32, #tpu.memory_space<vmem>>, vector<8x16xf32>
    tpu.vector_store %arg9[%c0_25, %c0_26], %27 {strides = array<i32>} : memref<13x16xf32, #tpu.memory_space<vmem>>, vector<8x16xf32>,
    %c0_27 = arith.constant 0 : index
    %c0_28 = arith.constant 0 : index
    %29 = vector.load %arg10[%c0_27, %c0_28] : memref<13x16xf32, #tpu.memory_space<vmem>>, vector<8x16xf32>
    %30 = vector.broadcast %13 : vector<8x1xf32> to vector<8x16xf32>
    %31 = arith.mulf %30, %20 : vector<8x16xf32>
    %32 = vector.broadcast %14 : vector<8x1xf32> to vector<8x16xf32>
    %33 = arith.mulf %32, %19 : vector<8x16xf32>
    %34 = arith.addf %31, %33 : vector<8x16xf32>
    %35 = arith.addf %29, %34 : vector<8x16xf32>
    %c0_29 = arith.constant 0 : index
    %c0_30 = arith.constant 0 : index
    %36 = vector.load %arg10[%c0_29, %c0_30] : memref<13x16xf32, #tpu.memory_space<vmem>>, vector<8x16xf32>
    tpu.vector_store %arg10[%c0_29, %c0_30], %35 {strides = array<i32>} : memref<13x16xf32, #tpu.memory_space<vmem>>, vector<8x16xf32>,
    %37 = vector.extract_strided_slice %16 {offsets = [0, 16], sizes = [8, 16], strides = [1, 1]} : vector<8x96xf32> to vector<8x16xf32>
    %38 = vector.extract_strided_slice %18 {offsets = [0, 16], sizes = [8, 16], strides = [1, 1]} : vector<8x96xf32> to vector<8x16xf32>
    %c1 = arith.constant 1 : index
    %c0_31 = arith.constant 0 : index
    %39 = vector.load %arg9[%c1, %c0_31] : memref<13x16xf32, #tpu.memory_space<vmem>>, vector<8x16xf32>
    %40 = vector.broadcast %13 : vector<8x1xf32> to vector<8x16xf32>
    %41 = arith.mulf %40, %37 : vector<8x16xf32>
    %42 = vector.broadcast %14 : vector<8x1xf32> to vector<8x16xf32>
    %43 = arith.mulf %42, %38 : vector<8x16xf32>
    %44 = arith.subf %41, %43 : vector<8x16xf32>
    %45 = arith.addf %39, %44 : vector<8x16xf32>
    %c1_32 = arith.constant 1 : index
    %c0_33 = arith.constant 0 : index
    %46 = vector.load %arg9[%c1_32, %c0_33] : memref<13x16xf32, #tpu.memory_space<vmem>>, vector<8x16xf32>
    tpu.vector_store %arg9[%c1_32, %c0_33], %45 {strides = array<i32>} : memref<13x16xf32, #tpu.memory_space<vmem>>, vector<8x16xf32>,
    %c1_34 = arith.constant 1 : index
    %c0_35 = arith.constant 0 : index
    %47 = vector.load %arg10[%c1_34, %c0_35] : memref<13x16xf32, #tpu.memory_space<vmem>>, vector<8x16xf32>
    %48 = vector.broadcast %13 : vector<8x1xf32> to vector<8x16xf32>
    %49 = arith.mulf %48, %38 : vector<8x16xf32>
    %50 = vector.broadcast %14 : vector<8x1xf32> to vector<8x16xf32>
    %51 = arith.mulf %50, %37 : vector<8x16xf32>
    %52 = arith.addf %49, %51 : vector<8x16xf32>
    %53 = arith.addf %47, %52 : vector<8x16xf32>
    %c1_36 = arith.constant 1 : index
    %c0_37 = arith.constant 0 : index
    %54 = vector.load %arg10[%c1_36, %c0_37] : memref<13x16xf32, #tpu.memory_space<vmem>>, vector<8x16xf32>
    tpu.vector_store %arg10[%c1_36, %c0_37], %53 {strides = array<i32>} : memref<13x16xf32, #tpu.memory_space<vmem>>, vector<8x16xf32>,
    %55 = vector.extract_strided_slice %16 {offsets = [0, 32], sizes = [8, 16], strides = [1, 1]} : vector<8x96xf32> to vector<8x16xf32>
    %56 = vector.extract_strided_slice %18 {offsets = [0, 32], sizes = [8, 16], strides = [1, 1]} : vector<8x96xf32> to vector<8x16xf32>
    %c2 = arith.constant 2 : index
    %c0_38 = arith.constant 0 : index
    %57 = vector.load %arg9[%c2, %c0_38] : memref<13x16xf32, #tpu.memory_space<vmem>>, vector<8x16xf32>
    %58 = vector.broadcast %13 : vector<8x1xf32> to vector<8x16xf32>
    %59 = arith.mulf %58, %55 : vector<8x16xf32>
    %60 = vector.broadcast %14 : vector<8x1xf32> to vector<8x16xf32>
    %61 = arith.mulf %60, %56 : vector<8x16xf32>
    %62 = arith.subf %59, %61 : vector<8x16xf32>
    %63 = arith.addf %57, %62 : vector<8x16xf32>
    %c2_39 = arith.constant 2 : index
    %c0_40 = arith.constant 0 : index
    %64 = vector.load %arg9[%c2_39, %c0_40] : memref<13x16xf32, #tpu.memory_space<vmem>>, vector<8x16xf32>
    tpu.vector_store %arg9[%c2_39, %c0_40], %63 {strides = array<i32>} : memref<13x16xf32, #tpu.memory_space<vmem>>, vector<8x16xf32>,
    %c2_41 = arith.constant 2 : index
    %c0_42 = arith.constant 0 : index
    %65 = vector.load %arg10[%c2_41, %c0_42] : memref<13x16xf32, #tpu.memory_space<vmem>>, vector<8x16xf32>
    %66 = vector.broadcast %13 : vector<8x1xf32> to vector<8x16xf32>
    %67 = arith.mulf %66, %56 : vector<8x16xf32>
    %68 = vector.broadcast %14 : vector<8x1xf32> to vector<8x16xf32>
    %69 = arith.mulf %68, %55 : vector<8x16xf32>
    %70 = arith.addf %67, %69 : vector<8x16xf32>
    %71 = arith.addf %65, %70 : vector<8x16xf32>
    %c2_43 = arith.constant 2 : index
    %c0_44 = arith.constant 0 : index
    %72 = vector.load %arg10[%c2_43, %c0_44] : memref<13x16xf32, #tpu.memory_space<vmem>>, vector<8x16xf32>
    tpu.vector_store %arg10[%c2_43, %c0_44], %71 {strides = array<i32>} : memref<13x16xf32, #tpu.memory_space<vmem>>, vector<8x16xf32>,
    %73 = vector.extract_strided_slice %16 {offsets = [0, 48], sizes = [8, 16], strides = [1, 1]} : vector<8x96xf32> to vector<8x16xf32>
    %74 = vector.extract_strided_slice %18 {offsets = [0, 48], sizes = [8, 16], strides = [1, 1]} : vector<8x96xf32> to vector<8x16xf32>
    %c3 = arith.constant 3 : index
    %c0_45 = arith.constant 0 : index
    %75 = vector.load %arg9[%c3, %c0_45] : memref<13x16xf32, #tpu.memory_space<vmem>>, vector<8x16xf32>
    %76 = vector.broadcast %13 : vector<8x1xf32> to vector<8x16xf32>
    %77 = arith.mulf %76, %73 : vector<8x16xf32>
    %78 = vector.broadcast %14 : vector<8x1xf32> to vector<8x16xf32>
    %79 = arith.mulf %78, %74 : vector<8x16xf32>
    %80 = arith.subf %77, %79 : vector<8x16xf32>
    %81 = arith.addf %75, %80 : vector<8x16xf32>
    %c3_46 = arith.constant 3 : index
    %c0_47 = arith.constant 0 : index
    %82 = vector.load %arg9[%c3_46, %c0_47] : memref<13x16xf32, #tpu.memory_space<vmem>>, vector<8x16xf32>
    tpu.vector_store %arg9[%c3_46, %c0_47], %81 {strides = array<i32>} : memref<13x16xf32, #tpu.memory_space<vmem>>, vector<8x16xf32>,
    %c3_48 = arith.constant 3 : index
    %c0_49 = arith.constant 0 : index
    %83 = vector.load %arg10[%c3_48, %c0_49] : memref<13x16xf32, #tpu.memory_space<vmem>>, vector<8x16xf32>
    %84 = vector.broadcast %13 : vector<8x1xf32> to vector<8x16xf32>
    %85 = arith.mulf %84, %74 : vector<8x16xf32>
    %86 = vector.broadcast %14 : vector<8x1xf32> to vector<8x16xf32>
    %87 = arith.mulf %86, %73 : vector<8x16xf32>
    %88 = arith.addf %85, %87 : vector<8x16xf32>
    %89 = arith.addf %83, %88 : vector<8x16xf32>
    %c3_50 = arith.constant 3 : index
    %c0_51 = arith.constant 0 : index
    %90 = vector.load %arg10[%c3_50, %c0_51] : memref<13x16xf32, #tpu.memory_space<vmem>>, vector<8x16xf32>
    tpu.vector_store %arg10[%c3_50, %c0_51], %89 {strides = array<i32>} : memref<13x16xf32, #tpu.memory_space<vmem>>, vector<8x16xf32>,
    %91 = vector.extract_strided_slice %16 {offsets = [0, 64], sizes = [8, 16], strides = [1, 1]} : vector<8x96xf32> to vector<8x16xf32>
    %92 = vector.extract_strided_slice %18 {offsets = [0, 64], sizes = [8, 16], strides = [1, 1]} : vector<8x96xf32> to vector<8x16xf32>
    %c4 = arith.constant 4 : index
    %c0_52 = arith.constant 0 : index
    %93 = vector.load %arg9[%c4, %c0_52] : memref<13x16xf32, #tpu.memory_space<vmem>>, vector<8x16xf32>
    %94 = vector.broadcast %13 : vector<8x1xf32> to vector<8x16xf32>
    %95 = arith.mulf %94, %91 : vector<8x16xf32>
    %96 = vector.broadcast %14 : vector<8x1xf32> to vector<8x16xf32>
    %97 = arith.mulf %96, %92 : vector<8x16xf32>
    %98 = arith.subf %95, %97 : vector<8x16xf32>
    %99 = arith.addf %93, %98 : vector<8x16xf32>
    %c4_53 = arith.constant 4 : index
    %c0_54 = arith.constant 0 : index
    %100 = vector.load %arg9[%c4_53, %c0_54] : memref<13x16xf32, #tpu.memory_space<vmem>>, vector<8x16xf32>
    tpu.vector_store %arg9[%c4_53, %c0_54], %99 {strides = array<i32>} : memref<13x16xf32, #tpu.memory_space<vmem>>, vector<8x16xf32>,
    %c4_55 = arith.constant 4 : index
    %c0_56 = arith.constant 0 : index
    %101 = vector.load %arg10[%c4_55, %c0_56] : memref<13x16xf32, #tpu.memory_space<vmem>>, vector<8x16xf32>
    %102 = vector.broadcast %13 : vector<8x1xf32> to vector<8x16xf32>
    %103 = arith.mulf %102, %92 : vector<8x16xf32>
    %104 = vector.broadcast %14 : vector<8x1xf32> to vector<8x16xf32>
    %105 = arith.mulf %104, %91 : vector<8x16xf32>
    %106 = arith.addf %103, %105 : vector<8x16xf32>
    %107 = arith.addf %101, %106 : vector<8x16xf32>
    %c4_57 = arith.constant 4 : index
    %c0_58 = arith.constant 0 : index
    %108 = vector.load %arg10[%c4_57, %c0_58] : memref<13x16xf32, #tpu.memory_space<vmem>>, vector<8x16xf32>
    tpu.vector_store %arg10[%c4_57, %c0_58], %107 {strides = array<i32>} : memref<13x16xf32, #tpu.memory_space<vmem>>, vector<8x16xf32>,
    %109 = vector.extract_strided_slice %16 {offsets = [0, 80], sizes = [8, 16], strides = [1, 1]} : vector<8x96xf32> to vector<8x16xf32>
    %110 = vector.extract_strided_slice %18 {offsets = [0, 80], sizes = [8, 16], strides = [1, 1]} : vector<8x96xf32> to vector<8x16xf32>
    %c5 = arith.constant 5 : index
    %c0_59 = arith.constant 0 : index
    %111 = vector.load %arg9[%c5, %c0_59] : memref<13x16xf32, #tpu.memory_space<vmem>>, vector<8x16xf32>
    %112 = vector.broadcast %13 : vector<8x1xf32> to vector<8x16xf32>
    %113 = arith.mulf %112, %109 : vector<8x16xf32>
    %114 = vector.broadcast %14 : vector<8x1xf32> to vector<8x16xf32>
    %115 = arith.mulf %114, %110 : vector<8x16xf32>
    %116 = arith.subf %113, %115 : vector<8x16xf32>
    %117 = arith.addf %111, %116 : vector<8x16xf32>
    %c5_60 = arith.constant 5 : index
    %c0_61 = arith.constant 0 : index
    %118 = vector.load %arg9[%c5_60, %c0_61] : memref<13x16xf32, #tpu.memory_space<vmem>>, vector<8x16xf32>
    tpu.vector_store %arg9[%c5_60, %c0_61], %117 {strides = array<i32>} : memref<13x16xf32, #tpu.memory_space<vmem>>, vector<8x16xf32>,
    %c5_62 = arith.constant 5 : index
    %c0_63 = arith.constant 0 : index
    %119 = vector.load %arg10[%c5_62, %c0_63] : memref<13x16xf32, #tpu.memory_space<vmem>>, vector<8x16xf32>
    %120 = vector.broadcast %13 : vector<8x1xf32> to vector<8x16xf32>
    %121 = arith.mulf %120, %110 : vector<8x16xf32>
    %122 = vector.broadcast %14 : vector<8x1xf32> to vector<8x16xf32>
    %123 = arith.mulf %122, %109 : vector<8x16xf32>
    %124 = arith.addf %121, %123 : vector<8x16xf32>
    %125 = arith.addf %119, %124 : vector<8x16xf32>
    %c5_64 = arith.constant 5 : index
    %c0_65 = arith.constant 0 : index
    %126 = vector.load %arg10[%c5_64, %c0_65] : memref<13x16xf32, #tpu.memory_space<vmem>>, vector<8x16xf32>
    tpu.vector_store %arg10[%c5_64, %c0_65], %125 {strides = array<i32>} : memref<13x16xf32, #tpu.memory_space<vmem>>, vector<8x16xf32>,
    %127 = vector.extract_strided_slice %11 {offsets = [0, 1], sizes = [8, 1], strides = [1, 1]} : vector<8x2xf32> to vector<8x1xf32>
    %128 = vector.extract_strided_slice %12 {offsets = [0, 1], sizes = [8, 1], strides = [1, 1]} : vector<8x2xf32> to vector<8x1xf32>
    %c1_66 = arith.constant 1 : index
    %c0_67 = arith.constant 0 : index
    %c0_68 = arith.constant 0 : index
    %129 = vector.load %arg3[%c1_66, %c0_67, %c0_68] : memref<2x8x96xf32, #tpu.memory_space<vmem>>, vector<1x8x96xf32>
    %130 = vector.shape_cast %129 : vector<1x8x96xf32> to vector<8x96xf32>
    %c1_69 = arith.constant 1 : index
    %c0_70 = arith.constant 0 : index
    %c0_71 = arith.constant 0 : index
    %131 = vector.load %arg4[%c1_69, %c0_70, %c0_71] : memref<2x8x96xf32, #tpu.memory_space<vmem>>, vector<1x8x96xf32>
    %132 = vector.shape_cast %131 : vector<1x8x96xf32> to vector<8x96xf32>
    %133 = vector.extract_strided_slice %130 {offsets = [0, 0], sizes = [8, 16], strides = [1, 1]} : vector<8x96xf32> to vector<8x16xf32>
    %134 = vector.extract_strided_slice %132 {offsets = [0, 0], sizes = [8, 16], strides = [1, 1]} : vector<8x96xf32> to vector<8x16xf32>
    %c0_72 = arith.constant 0 : index
    %c0_73 = arith.constant 0 : index
    %135 = vector.load %arg9[%c0_72, %c0_73] : memref<13x16xf32, #tpu.memory_space<vmem>>, vector<8x16xf32>
    %136 = vector.broadcast %127 : vector<8x1xf32> to vector<8x16xf32>
    %137 = arith.mulf %136, %133 : vector<8x16xf32>
    %138 = vector.broadcast %128 : vector<8x1xf32> to vector<8x16xf32>
    %139 = arith.mulf %138, %134 : vector<8x16xf32>
    %140 = arith.subf %137, %139 : vector<8x16xf32>
    %141 = arith.addf %135, %140 : vector<8x16xf32>
    %c0_74 = arith.constant 0 : index
    %c0_75 = arith.constant 0 : index
    %142 = vector.load %arg9[%c0_74, %c0_75] : memref<13x16xf32, #tpu.memory_space<vmem>>, vector<8x16xf32>
    tpu.vector_store %arg9[%c0_74, %c0_75], %141 {strides = array<i32>} : memref<13x16xf32, #tpu.memory_space<vmem>>, vector<8x16xf32>,
    %c0_76 = arith.constant 0 : index
    %c0_77 = arith.constant 0 : index
    %143 = vector.load %arg10[%c0_76, %c0_77] : memref<13x16xf32, #tpu.memory_space<vmem>>, vector<8x16xf32>
    %144 = vector.broadcast %127 : vector<8x1xf32> to vector<8x16xf32>
    %145 = arith.mulf %144, %134 : vector<8x16xf32>
    %146 = vector.broadcast %128 : vector<8x1xf32> to vector<8x16xf32>
    %147 = arith.mulf %146, %133 : vector<8x16xf32>
    %148 = arith.addf %145, %147 : vector<8x16xf32>
    %149 = arith.addf %143, %148 : vector<8x16xf32>
    %c0_78 = arith.constant 0 : index
    %c0_79 = arith.constant 0 : index
    %150 = vector.load %arg10[%c0_78, %c0_79] : memref<13x16xf32, #tpu.memory_space<vmem>>, vector<8x16xf32>
    tpu.vector_store %arg10[%c0_78, %c0_79], %149 {strides = array<i32>} : memref<13x16xf32, #tpu.memory_space<vmem>>, vector<8x16xf32>,
    %151 = vector.extract_strided_slice %130 {offsets = [0, 16], sizes = [8, 16], strides = [1, 1]} : vector<8x96xf32> to vector<8x16xf32>
    %152 = vector.extract_strided_slice %132 {offsets = [0, 16], sizes = [8, 16], strides = [1, 1]} : vector<8x96xf32> to vector<8x16xf32>
    %c1_80 = arith.constant 1 : index
    %c0_81 = arith.constant 0 : index
    %153 = vector.load %arg9[%c1_80, %c0_81] : memref<13x16xf32, #tpu.memory_space<vmem>>, vector<8x16xf32>
    %154 = vector.broadcast %127 : vector<8x1xf32> to vector<8x16xf32>
    %155 = arith.mulf %154, %151 : vector<8x16xf32>
    %156 = vector.broadcast %128 : vector<8x1xf32> to vector<8x16xf32>
    %157 = arith.mulf %156, %152 : vector<8x16xf32>
    %158 = arith.subf %155, %157 : vector<8x16xf32>
    %159 = arith.addf %153, %158 : vector<8x16xf32>
    %c1_82 = arith.constant 1 : index
    %c0_83 = arith.constant 0 : index
    %160 = vector.load %arg9[%c1_82, %c0_83] : memref<13x16xf32, #tpu.memory_space<vmem>>, vector<8x16xf32>
    tpu.vector_store %arg9[%c1_82, %c0_83], %159 {strides = array<i32>} : memref<13x16xf32, #tpu.memory_space<vmem>>, vector<8x16xf32>,
    %c1_84 = arith.constant 1 : index
    %c0_85 = arith.constant 0 : index
    %161 = vector.load %arg10[%c1_84, %c0_85] : memref<13x16xf32, #tpu.memory_space<vmem>>, vector<8x16xf32>
    %162 = vector.broadcast %127 : vector<8x1xf32> to vector<8x16xf32>
    %163 = arith.mulf %162, %152 : vector<8x16xf32>
    %164 = vector.broadcast %128 : vector<8x1xf32> to vector<8x16xf32>
    %165 = arith.mulf %164, %151 : vector<8x16xf32>
    %166 = arith.addf %163, %165 : vector<8x16xf32>
    %167 = arith.addf %161, %166 : vector<8x16xf32>
    %c1_86 = arith.constant 1 : index
    %c0_87 = arith.constant 0 : index
    %168 = vector.load %arg10[%c1_86, %c0_87] : memref<13x16xf32, #tpu.memory_space<vmem>>, vector<8x16xf32>
    tpu.vector_store %arg10[%c1_86, %c0_87], %167 {strides = array<i32>} : memref<13x16xf32, #tpu.memory_space<vmem>>, vector<8x16xf32>,
    %169 = vector.extract_strided_slice %130 {offsets = [0, 32], sizes = [8, 16], strides = [1, 1]} : vector<8x96xf32> to vector<8x16xf32>
    %170 = vector.extract_strided_slice %132 {offsets = [0, 32], sizes = [8, 16], strides = [1, 1]} : vector<8x96xf32> to vector<8x16xf32>
    %c2_88 = arith.constant 2 : index
    %c0_89 = arith.constant 0 : index
    %171 = vector.load %arg9[%c2_88, %c0_89] : memref<13x16xf32, #tpu.memory_space<vmem>>, vector<8x16xf32>
    %172 = vector.broadcast %127 : vector<8x1xf32> to vector<8x16xf32>
    %173 = arith.mulf %172, %169 : vector<8x16xf32>
    %174 = vector.broadcast %128 : vector<8x1xf32> to vector<8x16xf32>
    %175 = arith.mulf %174, %170 : vector<8x16xf32>
    %176 = arith.subf %173, %175 : vector<8x16xf32>
    %177 = arith.addf %171, %176 : vector<8x16xf32>
    %c2_90 = arith.constant 2 : index
    %c0_91 = arith.constant 0 : index
    %178 = vector.load %arg9[%c2_90, %c0_91] : memref<13x16xf32, #tpu.memory_space<vmem>>, vector<8x16xf32>
    tpu.vector_store %arg9[%c2_90, %c0_91], %177 {strides = array<i32>} : memref<13x16xf32, #tpu.memory_space<vmem>>, vector<8x16xf32>,
    %c2_92 = arith.constant 2 : index
    %c0_93 = arith.constant 0 : index
    %179 = vector.load %arg10[%c2_92, %c0_93] : memref<13x16xf32, #tpu.memory_space<vmem>>, vector<8x16xf32>
    %180 = vector.broadcast %127 : vector<8x1xf32> to vector<8x16xf32>
    %181 = arith.mulf %180, %170 : vector<8x16xf32>
    %182 = vector.broadcast %128 : vector<8x1xf32> to vector<8x16xf32>
    %183 = arith.mulf %182, %169 : vector<8x16xf32>
    %184 = arith.addf %181, %183 : vector<8x16xf32>
    %185 = arith.addf %179, %184 : vector<8x16xf32>
    %c2_94 = arith.constant 2 : index
    %c0_95 = arith.constant 0 : index
    %186 = vector.load %arg10[%c2_94, %c0_95] : memref<13x16xf32, #tpu.memory_space<vmem>>, vector<8x16xf32>
    tpu.vector_store %arg10[%c2_94, %c0_95], %185 {strides = array<i32>} : memref<13x16xf32, #tpu.memory_space<vmem>>, vector<8x16xf32>,
    %187 = vector.extract_strided_slice %130 {offsets = [0, 48], sizes = [8, 16], strides = [1, 1]} : vector<8x96xf32> to vector<8x16xf32>
    %188 = vector.extract_strided_slice %132 {offsets = [0, 48], sizes = [8, 16], strides = [1, 1]} : vector<8x96xf32> to vector<8x16xf32>
    %c3_96 = arith.constant 3 : index
    %c0_97 = arith.constant 0 : index
    %189 = vector.load %arg9[%c3_96, %c0_97] : memref<13x16xf32, #tpu.memory_space<vmem>>, vector<8x16xf32>
    %190 = vector.broadcast %127 : vector<8x1xf32> to vector<8x16xf32>
    %191 = arith.mulf %190, %187 : vector<8x16xf32>
    %192 = vector.broadcast %128 : vector<8x1xf32> to vector<8x16xf32>
    %193 = arith.mulf %192, %188 : vector<8x16xf32>
    %194 = arith.subf %191, %193 : vector<8x16xf32>
    %195 = arith.addf %189, %194 : vector<8x16xf32>
    %c3_98 = arith.constant 3 : index
    %c0_99 = arith.constant 0 : index
    %196 = vector.load %arg9[%c3_98, %c0_99] : memref<13x16xf32, #tpu.memory_space<vmem>>, vector<8x16xf32>
    tpu.vector_store %arg9[%c3_98, %c0_99], %195 {strides = array<i32>} : memref<13x16xf32, #tpu.memory_space<vmem>>, vector<8x16xf32>,
    %c3_100 = arith.constant 3 : index
    %c0_101 = arith.constant 0 : index
    %197 = vector.load %arg10[%c3_100, %c0_101] : memref<13x16xf32, #tpu.memory_space<vmem>>, vector<8x16xf32>
    %198 = vector.broadcast %127 : vector<8x1xf32> to vector<8x16xf32>
    %199 = arith.mulf %198, %188 : vector<8x16xf32>
    %200 = vector.broadcast %128 : vector<8x1xf32> to vector<8x16xf32>
    %201 = arith.mulf %200, %187 : vector<8x16xf32>
    %202 = arith.addf %199, %201 : vector<8x16xf32>
    %203 = arith.addf %197, %202 : vector<8x16xf32>
    %c3_102 = arith.constant 3 : index
    %c0_103 = arith.constant 0 : index
    %204 = vector.load %arg10[%c3_102, %c0_103] : memref<13x16xf32, #tpu.memory_space<vmem>>, vector<8x16xf32>
    tpu.vector_store %arg10[%c3_102, %c0_103], %203 {strides = array<i32>} : memref<13x16xf32, #tpu.memory_space<vmem>>, vector<8x16xf32>,
    %205 = vector.extract_strided_slice %130 {offsets = [0, 64], sizes = [8, 16], strides = [1, 1]} : vector<8x96xf32> to vector<8x16xf32>
    %206 = vector.extract_strided_slice %132 {offsets = [0, 64], sizes = [8, 16], strides = [1, 1]} : vector<8x96xf32> to vector<8x16xf32>
    %c4_104 = arith.constant 4 : index
    %c0_105 = arith.constant 0 : index
    %207 = vector.load %arg9[%c4_104, %c0_105] : memref<13x16xf32, #tpu.memory_space<vmem>>, vector<8x16xf32>
    %208 = vector.broadcast %127 : vector<8x1xf32> to vector<8x16xf32>
    %209 = arith.mulf %208, %205 : vector<8x16xf32>
    %210 = vector.broadcast %128 : vector<8x1xf32> to vector<8x16xf32>
    %211 = arith.mulf %210, %206 : vector<8x16xf32>
    %212 = arith.subf %209, %211 : vector<8x16xf32>
    %213 = arith.addf %207, %212 : vector<8x16xf32>
    %c4_106 = arith.constant 4 : index
    %c0_107 = arith.constant 0 : index
    %214 = vector.load %arg9[%c4_106, %c0_107] : memref<13x16xf32, #tpu.memory_space<vmem>>, vector<8x16xf32>
    tpu.vector_store %arg9[%c4_106, %c0_107], %213 {strides = array<i32>} : memref<13x16xf32, #tpu.memory_space<vmem>>, vector<8x16xf32>,
    %c4_108 = arith.constant 4 : index
    %c0_109 = arith.constant 0 : index
    %215 = vector.load %arg10[%c4_108, %c0_109] : memref<13x16xf32, #tpu.memory_space<vmem>>, vector<8x16xf32>
    %216 = vector.broadcast %127 : vector<8x1xf32> to vector<8x16xf32>
    %217 = arith.mulf %216, %206 : vector<8x16xf32>
    %218 = vector.broadcast %128 : vector<8x1xf32> to vector<8x16xf32>
    %219 = arith.mulf %218, %205 : vector<8x16xf32>
    %220 = arith.addf %217, %219 : vector<8x16xf32>
    %221 = arith.addf %215, %220 : vector<8x16xf32>
    %c4_110 = arith.constant 4 : index
    %c0_111 = arith.constant 0 : index
    %222 = vector.load %arg10[%c4_110, %c0_111] : memref<13x16xf32, #tpu.memory_space<vmem>>, vector<8x16xf32>
    tpu.vector_store %arg10[%c4_110, %c0_111], %221 {strides = array<i32>} : memref<13x16xf32, #tpu.memory_space<vmem>>, vector<8x16xf32>,
    %223 = vector.extract_strided_slice %130 {offsets = [0, 80], sizes = [8, 16], strides = [1, 1]} : vector<8x96xf32> to vector<8x16xf32>
    %224 = vector.extract_strided_slice %132 {offsets = [0, 80], sizes = [8, 16], strides = [1, 1]} : vector<8x96xf32> to vector<8x16xf32>
    %c5_112 = arith.constant 5 : index
    %c0_113 = arith.constant 0 : index
    %225 = vector.load %arg9[%c5_112, %c0_113] : memref<13x16xf32, #tpu.memory_space<vmem>>, vector<8x16xf32>
    %226 = vector.broadcast %127 : vector<8x1xf32> to vector<8x16xf32>
    %227 = arith.mulf %226, %223 : vector<8x16xf32>
    %228 = vector.broadcast %128 : vector<8x1xf32> to vector<8x16xf32>
    %229 = arith.mulf %228, %224 : vector<8x16xf32>
    %230 = arith.subf %227, %229 : vector<8x16xf32>
    %231 = arith.addf %225, %230 : vector<8x16xf32>
    %c5_114 = arith.constant 5 : index
    %c0_115 = arith.constant 0 : index
    %232 = vector.load %arg9[%c5_114, %c0_115] : memref<13x16xf32, #tpu.memory_space<vmem>>, vector<8x16xf32>
    tpu.vector_store %arg9[%c5_114, %c0_115], %231 {strides = array<i32>} : memref<13x16xf32, #tpu.memory_space<vmem>>, vector<8x16xf32>,
    %c5_116 = arith.constant 5 : index
    %c0_117 = arith.constant 0 : index
    %233 = vector.load %arg10[%c5_116, %c0_117] : memref<13x16xf32, #tpu.memory_space<vmem>>, vector<8x16xf32>
    %234 = vector.broadcast %127 : vector<8x1xf32> to vector<8x16xf32>
    %235 = arith.mulf %234, %224 : vector<8x16xf32>
    %236 = vector.broadcast %128 : vector<8x1xf32> to vector<8x16xf32>
    %237 = arith.mulf %236, %223 : vector<8x16xf32>
    %238 = arith.addf %235, %237 : vector<8x16xf32>
    %239 = arith.addf %233, %238 : vector<8x16xf32>
    %c5_118 = arith.constant 5 : index
    %c0_119 = arith.constant 0 : index
    %240 = vector.load %arg10[%c5_118, %c0_119] : memref<13x16xf32, #tpu.memory_space<vmem>>, vector<8x16xf32>
    tpu.vector_store %arg10[%c5_118, %c0_119], %239 {strides = array<i32>} : memref<13x16xf32, #tpu.memory_space<vmem>>, vector<8x16xf32>,
    %c0_120 = arith.constant 0 : index
    %c0_121 = arith.constant 0 : index
    %241 = vector.load %arg9[%c0_120, %c0_121] : memref<13x16xf32, #tpu.memory_space<vmem>>, vector<8x16xf32>
    %c0_122 = arith.constant 0 : index
    %c0_123 = arith.constant 0 : index
    %242 = vector.load %arg5[%c0_122, %c0_123] : memref<8x16xf32, #tpu.memory_space<vmem>>, vector<8x16xf32>
    tpu.vector_store %arg5[%c0_122, %c0_123], %241 {strides = array<i32>} : memref<8x16xf32, #tpu.memory_space<vmem>>, vector<8x16xf32>,
    %c0_124 = arith.constant 0 : index
    %c0_125 = arith.constant 0 : index
    %243 = vector.load %arg10[%c0_124, %c0_125] : memref<13x16xf32, #tpu.memory_space<vmem>>, vector<8x16xf32>
    %c0_126 = arith.constant 0 : index
    %c0_127 = arith.constant 0 : index
    %244 = vector.load %arg6[%c0_126, %c0_127] : memref<8x16xf32, #tpu.memory_space<vmem>>, vector<8x16xf32>
    tpu.vector_store %arg6[%c0_126, %c0_127], %243 {strides = array<i32>} : memref<8x16xf32, #tpu.memory_space<vmem>>, vector<8x16xf32>,
    %c8 = arith.constant 8 : index
    %c0_128 = arith.constant 0 : index
    %245 = vector.load %arg9[%c8, %c0_128] : memref<13x16xf32, #tpu.memory_space<vmem>>, vector<5x16xf32>
    %c0_129 = arith.constant 0 : index
    %c0_130 = arith.constant 0 : index
    %246 = vector.load %arg11[%c0_129, %c0_130] : memref<5x16xf32, #tpu.memory_space<vmem>>, vector<5x16xf32>
    tpu.vector_store %arg11[%c0_129, %c0_130], %245 {strides = array<i32>} : memref<5x16xf32, #tpu.memory_space<vmem>>, vector<5x16xf32>,
    %c8_131 = arith.constant 8 : index
    %c0_132 = arith.constant 0 : index
    %247 = vector.load %arg10[%c8_131, %c0_132] : memref<13x16xf32, #tpu.memory_space<vmem>>, vector<5x16xf32>
    %c0_133 = arith.constant 0 : index
    %c0_134 = arith.constant 0 : index
    %248 = vector.load %arg12[%c0_133, %c0_134] : memref<5x16xf32, #tpu.memory_space<vmem>>, vector<5x16xf32>
    tpu.vector_store %arg12[%c0_133, %c0_134], %247 {strides = array<i32>} : memref<5x16xf32, #tpu.memory_space<vmem>>, vector<5x16xf32>,
    %c8_135 = arith.constant 8 : index
    %c0_136 = arith.constant 0 : index
    %249 = vector.load %arg9[%c8_135, %c0_136] : memref<13x16xf32, #tpu.memory_space<vmem>>, vector<5x16xf32>
    %c0_137 = arith.constant 0 : index
    %c0_138 = arith.constant 0 : index
    %250 = vector.load %arg7[%c0_137, %c0_138] : memref<5x16xf32, #tpu.memory_space<vmem>>, vector<5x16xf32>
    tpu.vector_store %arg7[%c0_137, %c0_138], %249 {strides = array<i32>} : memref<5x16xf32, #tpu.memory_space<vmem>>, vector<5x16xf32>,
    %c8_139 = arith.constant 8 : index
    %c0_140 = arith.constant 0 : index
    %251 = vector.load %arg10[%c8_139, %c0_140] : memref<13x16xf32, #tpu.memory_space<vmem>>, vector<5x16xf32>
    %c0_141 = arith.constant 0 : index
    %c0_142 = arith.constant 0 : index
    %252 = vector.load %arg8[%c0_141, %c0_142] : memref<5x16xf32, #tpu.memory_space<vmem>>, vector<5x16xf32>
    tpu.vector_store %arg8[%c0_141, %c0_142], %251 {strides = array<i32>} : memref<5x16xf32, #tpu.memory_space<vmem>>, vector<5x16xf32>,
    return
  }
  func.func @transform_0(%arg0: i32) -> (i32, i32) {
    %c0_i32 = arith.constant 0 : i32
    %c0_i32_0 = arith.constant 0 : i32
    return %arg0, %c0_i32 : i32, i32
  }
  func.func @transform_1(%arg0: i32) -> (i32, i32) {
    %c0_i32 = arith.constant 0 : i32
    %c0_i32_0 = arith.constant 0 : i32
    return %arg0, %c0_i32 : i32, i32
  }
  func.func @transform_2(%arg0: i32) -> (i32, i32, i32) {
    %c0_i32 = arith.constant 0 : i32
    %c0_i32_0 = arith.constant 0 : i32
    %c0_i32_1 = arith.constant 0 : i32
    return %c0_i32, %arg0, %c0_i32_0 : i32, i32, i32
  }
  func.func @transform_3(%arg0: i32) -> (i32, i32, i32) {
    %c0_i32 = arith.constant 0 : i32
    %c0_i32_0 = arith.constant 0 : i32
    %c0_i32_1 = arith.constant 0 : i32
    return %c0_i32, %arg0, %c0_i32_0 : i32, i32, i32
  }
  func.func @transform_4(%arg0: i32) -> (i32, i32) {
    %c0_i32 = arith.constant 0 : i32
    %c0_i32_0 = arith.constant 0 : i32
    return %arg0, %c0_i32 : i32, i32
  }
  func.func @transform_5(%arg0: i32) -> (i32, i32) {
    %c0_i32 = arith.constant 0 : i32
    %c0_i32_0 = arith.constant 0 : i32
    return %arg0, %c0_i32 : i32, i32
  }
  func.func @transform_6(%arg0: i32) -> (i32, i32) {
    %c0_i32 = arith.constant 0 : i32
    %c0_i32_0 = arith.constant 0 : i32
    %c0_i32_1 = arith.constant 0 : i32
    return %c0_i32, %c0_i32_0 : i32, i32
  }
  func.func @transform_7(%arg0: i32) -> (i32, i32) {
    %c0_i32 = arith.constant 0 : i32
    %c0_i32_0 = arith.constant 0 : i32
    %c0_i32_1 = arith.constant 0 : i32
    return %c0_i32, %c0_i32_0 : i32, i32
  }
}

</mosaic_0001>

<llo_original>
// kernel: tpu_custom_call.1
$region0: #{tpu_custom_call.1}
  #allocation0 [shape = 'u32[]', space=smem, size = 0x4, offset = 0x4, fixed_abs, tag = 'smem constant byte address 0x4 - core index']
  #allocation1 [shape = 'u32[144,128]{1,0:T(1,128)}', space=vmem, size = 0x12000, scoped, tag = 'internal scratch']
  #allocation2 [shape = 'f32[13,16]{1,0:T(8,128)}', space=vmem, size = 0x2000, scoped, tag = 'scratch operand']
  #allocation3 [shape = 'f32[13,16]{1,0:T(8,128)}', space=vmem, size = 0x2000, scoped, tag = 'scratch operand']
  #allocation4 [shape = 'f32[5,16]{1,0:T(8,128)}', space=vmem, size = 0x1000, scoped, tag = 'scratch operand']
  #allocation5 [shape = 'f32[5,16]{1,0:T(8,128)}', space=vmem, size = 0x1000, scoped, tag = 'scratch operand']
  %s0 = inlined_call_operand.vmem [shape: f32[8,2], index: 0, kind: input, shape index: {}]
  %s1 = inlined_call_operand.vmem [shape: f32[8,2], index: 1, kind: input, shape index: {}]
  %s2 = inlined_call_operand.vmem [shape: f32[2,8,96], index: 2, kind: input, shape index: {}]
  %s3 = inlined_call_operand.hbm [shape: f32[2,8,96], index: 3, kind: input, shape index: {}]
  %s4 = inlined_call_operand.hbm [shape: f32[8,16], index: 4, kind: output, shape index: {0}]
  %s5 = inlined_call_operand.hbm [shape: f32[8,16], index: 5, kind: output, shape index: {1}]
  %s6 = inlined_call_operand.hbm [shape: f32[5,16], index: 6, kind: output, shape index: {2}]
  %s7 = inlined_call_operand.hbm [shape: f32[5,16], index: 7, kind: output, shape index: {3}]
  %8 = xla_tuple %s4, %s5, %s6, %s7
  %s9 = sld [smem:[#allocation0]]
  $region58: #{tpu_custom_call.1} parent=0
    _
  %s11 = ssub.s32 1, %s9
  %s12 = scalar_select 0, %s11, %s9
  $region1: #{tpu_custom_call.1} parent=0
    #allocation6 [shape = 'u8[8192]{0}', space=vmem, size = 0x2000, scoped, tag = 'input window, operand 3, single buffered']
    #allocation7 [shape = 's32[1]{0}', space=sflag, size = 0x4, scoped, tag = 'scoped memory for tpu_custom_call.1']
    #allocation8 [shape = 's32[1]{0}', space=sflag, size = 0x4, scoped, tag = 'scoped memory for tpu_custom_call.1']
    #allocation9 [shape = 'u8[4096]{0}', space=vmem, size = 0x1000, scoped, tag = 'output window, operand 0, single buffered']
    #allocation10 [shape = 'u8[4096]{0}', space=vmem, size = 0x1000, scoped, tag = 'output window, operand 1, single buffered']
    #allocation11 [shape = 's32[1]{0}', space=sflag, size = 0x4, scoped, tag = 'scoped memory for tpu_custom_call.1']
    #allocation12 [shape = 'u8[4096]{0}', space=vmem, size = 0x1000, scoped, tag = 'output window, operand 2, single buffered']
    #allocation13 [shape = 'u8[4096]{0}', space=vmem, size = 0x1000, scoped, tag = 'output window, operand 3, single buffered']
    #allocation14 [shape = 's32[1]{0}', space=sflag, size = 0x4, scoped, tag = 'scoped memory for tpu_custom_call.1']
    %13 = vsyncpa [#allocation7], 0
    %14 = vsyncpa [#allocation8], 0
    %15 = vsyncpa [#allocation11], 0
    %16 = vsyncpa [#allocation14], 0
    // Predicated region
    $region2: #{tpu_custom_call.1} parent=1 // pred_check
      _
    $region3: #{tpu_custom_call.1} parent=1 // pred_check_branch
      %18 = sbr.rel (0) target = $region5
    $region4: #{tpu_custom_call.1} parent=1 // pred_region
      _
    $region5: #{tpu_custom_call.1} parent=1 // pred_fallthru
      _
    // Predicated region
    $region6: #{tpu_custom_call.1} parent=1 // pred_check
      _
    $region7: #{tpu_custom_call.1} parent=1 // pred_check_branch
      %20 = sbr.rel (0) target = $region9
    $region8: #{tpu_custom_call.1} parent=1 // pred_region
      _
    $region9: #{tpu_custom_call.1} parent=1 // pred_fallthru
      _
    // Predicated region
    $region10: #{tpu_custom_call.1} parent=1 // pred_check
      _
    $region11: #{tpu_custom_call.1} parent=1 // pred_check_branch
      %22 = sbr.rel (0) target = $region13
    $region12: #{tpu_custom_call.1} parent=1 // pred_region
      _
    $region13: #{tpu_custom_call.1} parent=1 // pred_fallthru
      _
    // Predicated region
    $region14: #{tpu_custom_call.1} parent=1 // pred_check
      _
    $region15: #{tpu_custom_call.1} parent=1 // pred_check_branch
      %24 = sbr.rel (0) target = $region17
    $region16: #{tpu_custom_call.1} parent=1 // pred_region
      %s26 = ssub.s32 256, 256
      %27 = vsyncadd [#allocation7], %s26
      %s28 = sshll.u32 [#allocation6], 4
      %s29 = int_to_ptr.vmem [resolvable:$true] %s28
      %34 = dma.hbm_to_vmem [thread:$0]  %s3, 256, %s29, [#allocation7], 128, 128, 8
    $region17: #{tpu_custom_call.1} parent=1 // pred_fallthru
      _
    // Predicated region
    $region18: #{tpu_custom_call.1} parent=1 // pred_check
      _
    $region19: #{tpu_custom_call.1} parent=1 // pred_check_branch
      %36 = sbr.rel (0) target = $region21
    $region20: #{tpu_custom_call.1} parent=1 // pred_region
      %37 = dma.done [#allocation7], 256
    $region21: #{tpu_custom_call.1} parent=1 // pred_fallthru
      _
    %p38 = scmp.eq.s32.totalorder 0, 0
    // Predicated region
    $region22: #{tpu_custom_call.1} parent=1 // pred_check
      %p39 = pneg %p38
    $region23: #{tpu_custom_call.1} parent=1 // pred_check_branch
      %41 = sbr.rel (%p39) target = $region25
    $region24: #{tpu_custom_call.1} parent=1 // pred_region
      %vm42 = vcmask 126976
      %43 = vst.msk [vmem:[#allocation4] sm:$0x1f] %vm42, 0.0
      %44 = vst.msk [vmem:[#allocation5] sm:$0x1f] %vm42, 0.0
    $region25: #{tpu_custom_call.1} parent=1 // pred_fallthru
      _
    %vm45 = vcmask 130048
    %46 = vst.msk [vmem:[#allocation2] sm:$0xff] %vm45, 0.0
    %vm47 = vcmask 126976
    %48 = vst.msk [vmem:[#allocation2 + $0x8] sm:$0x1f] %vm47, 0.0
    %49 = vst.msk [vmem:[#allocation3] sm:$0xff] %vm45, 0.0
    %50 = vst.msk [vmem:[#allocation3 + $0x8] sm:$0x1f] %vm47, 0.0
    %v51 = vld [vmem:[#allocation4] sm:$0x1f]
    %52 = vst.msk [vmem:[#allocation2] sm:$0x1f] %vm47, %v51
    %v53 = vld [vmem:[#allocation5] sm:$0x1f]
    %54 = vst.msk [vmem:[#allocation3] sm:$0x1f] %vm47, %v53
    %v55 = vld [vmem:[%s0] sm:$0xff]
    %v56 = vld [vmem:[%s1] sm:$0xff]
    %v57 = vld [vmem:[%s2] sm:$0xff]
    %v58 = vld [vmem:[#allocation6] sm:$0xff]
    %v59 = vld [vmem:[#allocation2] sm:$0xff]
    %61 = vset.pattern.permute.xlu0 0
    %62 = vperm.xlu0 %61, %v55
    %v63 = vpop.permute.xlu0 %62
    %v65 = vmul.f32 %v63, %v57
    %67 = vset.pattern.permute.xlu0 0
    %68 = vperm.xlu0 %67, %v56
    %v69 = vpop.permute.xlu0 %68
    %v71 = vmul.f32 %v69, %v58
    %v72 = vsub.f32 %v65, %v71
    %v73 = vadd.f32 %v59, %v72
    %74 = vst.msk [vmem:[#allocation2] sm:$0xff] %vm45, %v73
    %v75 = vld [vmem:[#allocation3] sm:$0xff]
    %v76 = vmul.f32 %v63, %v58
    %v77 = vmul.f32 %v69, %v57
    %v78 = vadd.f32 %v76, %v77
    %v79 = vadd.f32 %v75, %v78
    %80 = vst.msk [vmem:[#allocation3] sm:$0xff] %vm45, %v79
    %v81 = vld [vmem:[#allocation2 + $0x1] sm:$0xff]
    %83 = vrot.lane.b32.xlu0 %v72, 112
    %v84 = vpop.permute.xlu0 %83
    %v86 = vadd.f32 %v81, %v84
    %87 = vst.msk [vmem:[#allocation2 + $0x1] sm:$0xff] %vm45, %v86
    %v88 = vld [vmem:[#allocation3 + $0x1] sm:$0xff]
    %90 = vrot.lane.b32.xlu0 %v78, 112
    %v91 = vpop.permute.xlu0 %90
    %v93 = vadd.f32 %v88, %v91
    %94 = vst.msk [vmem:[#allocation3 + $0x1] sm:$0xff] %vm45, %v93
    %v95 = vld [vmem:[#allocation2 + $0x2] sm:$0xff]
    %96 = vrot.lane.b32.xlu0 %v72, 96
    %v97 = vpop.permute.xlu0 %96
    %v99 = vadd.f32 %v95, %v97
    %100 = vst.msk [vmem:[#allocation2 + $0x2] sm:$0xff] %vm45, %v99
    %v101 = vld [vmem:[#allocation3 + $0x2] sm:$0xff]
    %102 = vrot.lane.b32.xlu0 %v78, 96
    %v103 = vpop.permute.xlu0 %102
    %v105 = vadd.f32 %v101, %v103
    %106 = vst.msk [vmem:[#allocation3 + $0x2] sm:$0xff] %vm45, %v105
    %v107 = vld [vmem:[#allocation2 + $0x3] sm:$0xff]
    %108 = vrot.lane.b32.xlu0 %v72, 80
    %v109 = vpop.permute.xlu0 %108
    %v111 = vadd.f32 %v107, %v109
    %112 = vst.msk [vmem:[#allocation2 + $0x3] sm:$0xff] %vm45, %v111
    %v113 = vld [vmem:[#allocation3 + $0x3] sm:$0xff]
    %114 = vrot.lane.b32.xlu0 %v78, 80
    %v115 = vpop.permute.xlu0 %114
    %v117 = vadd.f32 %v113, %v115
    %118 = vst.msk [vmem:[#allocation3 + $0x3] sm:$0xff] %vm45, %v117
    %v119 = vld [vmem:[#allocation2 + $0x4] sm:$0xff]
    %120 = vrot.lane.b32.xlu0 %v72, 64
    %v121 = vpop.permute.xlu0 %120
    %v123 = vadd.f32 %v119, %v121
    %124 = vst.msk [vmem:[#allocation2 + $0x4] sm:$0xff] %vm45, %v123
    %v125 = vld [vmem:[#allocation3 + $0x4] sm:$0xff]
    %126 = vrot.lane.b32.xlu0 %v78, 64
    %v127 = vpop.permute.xlu0 %126
    %v129 = vadd.f32 %v125, %v127
    %130 = vst.msk [vmem:[#allocation3 + $0x4] sm:$0xff] %vm45, %v129
    %v131 = vld [vmem:[#allocation2 + $0x5] sm:$0xff]
    %132 = vrot.lane.b32.xlu0 %v72, 48
    %v133 = vpop.permute.xlu0 %132
    %v135 = vadd.f32 %v131, %v133
    %136 = vst.msk [vmem:[#allocation2 + $0x5] sm:$0xff] %vm45, %v135
    %v137 = vld [vmem:[#allocation3 + $0x5] sm:$0xff]
    %138 = vrot.lane.b32.xlu0 %v78, 48
    %v139 = vpop.permute.xlu0 %138
    %v141 = vadd.f32 %v137, %v139
    %142 = vst.msk [vmem:[#allocation3 + $0x5] sm:$0xff] %vm45, %v141
    %s143 = scalar_lea.vmem %s2, 8
    %v144 = vld [vmem:[%s143] sm:$0xff]
    %s145 = scalar_lea.vmem [#allocation6], 8
    %v146 = vld [vmem:[%s145] sm:$0xff]
    %v147 = vld [vmem:[#allocation2] sm:$0xff]
    %148 = vset.pattern.permute.xlu0 1
    %149 = vperm.xlu0 %148, %v55
    %v150 = vpop.permute.xlu0 %149
    %v152 = vmul.f32 %v150, %v144
    %153 = vset.pattern.permute.xlu0 1
    %154 = vperm.xlu0 %153, %v56
    %v155 = vpop.permute.xlu0 %154
    %v157 = vmul.f32 %v155, %v146
    %v158 = vsub.f32 %v152, %v157
    %v159 = vadd.f32 %v147, %v158
    %160 = vst.msk [vmem:[#allocation2] sm:$0xff] %vm45, %v159
    %v161 = vld [vmem:[#allocation3] sm:$0xff]
    %v162 = vmul.f32 %v150, %v146
    %v163 = vmul.f32 %v155, %v144
    %v164 = vadd.f32 %v162, %v163
    %v165 = vadd.f32 %v161, %v164
    %166 = vst.msk [vmem:[#allocation3] sm:$0xff] %vm45, %v165
    %v167 = vld [vmem:[#allocation2 + $0x1] sm:$0xff]
    %169 = vrot.lane.b32.xlu0 %v158, 112
    %v170 = vpop.permute.xlu0 %169
    %v172 = vadd.f32 %v167, %v170
    %173 = vst.msk [vmem:[#allocation2 + $0x1] sm:$0xff] %vm45, %v172
    %v174 = vld [vmem:[#allocation3 + $0x1] sm:$0xff]
    %176 = vrot.lane.b32.xlu0 %v164, 112
    %v177 = vpop.permute.xlu0 %176
    %v179 = vadd.f32 %v174, %v177
    %180 = vst.msk [vmem:[#allocation3 + $0x1] sm:$0xff] %vm45, %v179
    %v181 = vld [vmem:[#allocation2 + $0x2] sm:$0xff]
    %182 = vrot.lane.b32.xlu0 %v158, 96
    %v183 = vpop.permute.xlu0 %182
    %v185 = vadd.f32 %v181, %v183
    %186 = vst.msk [vmem:[#allocation2 + $0x2] sm:$0xff] %vm45, %v185
    %v187 = vld [vmem:[#allocation3 + $0x2] sm:$0xff]
    %188 = vrot.lane.b32.xlu0 %v164, 96
    %v189 = vpop.permute.xlu0 %188
    %v191 = vadd.f32 %v187, %v189
    %192 = vst.msk [vmem:[#allocation3 + $0x2] sm:$0xff] %vm45, %v191
    %v193 = vld [vmem:[#allocation2 + $0x3] sm:$0xff]
    %194 = vrot.lane.b32.xlu0 %v158, 80
    %v195 = vpop.permute.xlu0 %194
    %v197 = vadd.f32 %v193, %v195
    %198 = vst.msk [vmem:[#allocation2 + $0x3] sm:$0xff] %vm45, %v197
    %v199 = vld [vmem:[#allocation3 + $0x3] sm:$0xff]
    %200 = vrot.lane.b32.xlu0 %v164, 80
    %v201 = vpop.permute.xlu0 %200
    %v203 = vadd.f32 %v199, %v201
    %204 = vst.msk [vmem:[#allocation3 + $0x3] sm:$0xff] %vm45, %v203
    %v205 = vld [vmem:[#allocation2 + $0x4] sm:$0xff]
    %206 = vrot.lane.b32.xlu0 %v158, 64
    %v207 = vpop.permute.xlu0 %206
    %v209 = vadd.f32 %v205, %v207
    %210 = vst.msk [vmem:[#allocation2 + $0x4] sm:$0xff] %vm45, %v209
    %v211 = vld [vmem:[#allocation3 + $0x4] sm:$0xff]
    %212 = vrot.lane.b32.xlu0 %v164, 64
    %v213 = vpop.permute.xlu0 %212
    %v215 = vadd.f32 %v211, %v213
    %216 = vst.msk [vmem:[#allocation3 + $0x4] sm:$0xff] %vm45, %v215
    %v217 = vld [vmem:[#allocation2 + $0x5] sm:$0xff]
    %218 = vrot.lane.b32.xlu0 %v158, 48
    %v219 = vpop.permute.xlu0 %218
    %v221 = vadd.f32 %v217, %v219
    %222 = vst.msk [vmem:[#allocation2 + $0x5] sm:$0xff] %vm45, %v221
    %v223 = vld [vmem:[#allocation3 + $0x5] sm:$0xff]
    %224 = vrot.lane.b32.xlu0 %v164, 48
    %v225 = vpop.permute.xlu0 %224
    %v227 = vadd.f32 %v223, %v225
    %228 = vst.msk [vmem:[#allocation3 + $0x5] sm:$0xff] %vm45, %v227
    %v229 = vld [vmem:[#allocation2] sm:$0xff]
    %230 = vst.msk [vmem:[#allocation9] sm:$0xff] %vm45, %v229
    %v231 = vld [vmem:[#allocation3] sm:$0xff]
    %232 = vst.msk [vmem:[#allocation10] sm:$0xff] %vm45, %v231
    %v233 = vld [vmem:[#allocation2 + $0x8] sm:$0x1f]
    %234 = vst.msk [vmem:[#allocation4] sm:$0x1f] %vm47, %v233
    %v235 = vld [vmem:[#allocation3 + $0x8] sm:$0x1f]
    %236 = vst.msk [vmem:[#allocation5] sm:$0x1f] %vm47, %v235
    %v237 = vld [vmem:[#allocation2 + $0x8] sm:$0x1f]
    %238 = vst.msk [vmem:[#allocation12] sm:$0x1f] %vm47, %v237
    %v239 = vld [vmem:[#allocation3 + $0x8] sm:$0x1f]
    %240 = vst.msk [vmem:[#allocation13] sm:$0x1f] %vm47, %v239
    // Predicated region
    $region26: #{tpu_custom_call.1} parent=1 // pred_check
      _
    $region27: #{tpu_custom_call.1} parent=1 // pred_check_branch
      %242 = sbr.rel (0) target = $region29
    $region28: #{tpu_custom_call.1} parent=1 // pred_region
      %s244 = ssub.s32 128, 128
      %245 = vsyncadd [#allocation8], %s244
      %s247 = sshll.u32 [#allocation9], 4
      %s248 = int_to_ptr.vmem [resolvable:$true] %s247
      %250 = dma.vmem_to_hbm [thread:$0]  %s248, 128, %s4, [#allocation8]
    $region29: #{tpu_custom_call.1} parent=1 // pred_fallthru
      _
    // Predicated region
    $region30: #{tpu_custom_call.1} parent=1 // pred_check
      _
    $region31: #{tpu_custom_call.1} parent=1 // pred_check_branch
      %252 = sbr.rel (0) target = $region33
    $region32: #{tpu_custom_call.1} parent=1 // pred_region
      %s254 = ssub.s32 128, 128
      %255 = vsyncadd [#allocation11], %s254
      %s257 = sshll.u32 [#allocation10], 4
      %s258 = int_to_ptr.vmem [resolvable:$true] %s257
      %260 = dma.vmem_to_hbm [thread:$0]  %s258, 128, %s5, [#allocation11]
    $region33: #{tpu_custom_call.1} parent=1 // pred_fallthru
      _
    // Predicated region
    $region34: #{tpu_custom_call.1} parent=1 // pred_check
      _
    $region35: #{tpu_custom_call.1} parent=1 // pred_check_branch
      %262 = sbr.rel (0) target = $region37
    $region36: #{tpu_custom_call.1} parent=1 // pred_region
      %s264 = ssub.s32 128, 128
      %265 = vsyncadd [#allocation11], %s264
      %s267 = sshll.u32 [#allocation12], 4
      %s268 = int_to_ptr.vmem [resolvable:$true] %s267
      %270 = dma.vmem_to_hbm [thread:$0]  %s268, 128, %s6, [#allocation11]
    $region37: #{tpu_custom_call.1} parent=1 // pred_fallthru
      _
    // Predicated region
    $region38: #{tpu_custom_call.1} parent=1 // pred_check
      _
    $region39: #{tpu_custom_call.1} parent=1 // pred_check_branch
      %272 = sbr.rel (0) target = $region41
    $region40: #{tpu_custom_call.1} parent=1 // pred_region
      %s274 = ssub.s32 128, 128
      %275 = vsyncadd [#allocation14], %s274
      %s277 = sshll.u32 [#allocation13], 4
      %s278 = int_to_ptr.vmem [resolvable:$true] %s277
      %280 = dma.vmem_to_hbm [thread:$0]  %s278, 128, %s7, [#allocation14]
    $region41: #{tpu_custom_call.1} parent=1 // pred_fallthru
      _
    // Predicated region
    $region42: #{tpu_custom_call.1} parent=1 // pred_check
      _
    $region43: #{tpu_custom_call.1} parent=1 // pred_check_branch
      %282 = sbr.rel (0) target = $region45
    $region44: #{tpu_custom_call.1} parent=1 // pred_region
      %283 = dma.done [#allocation8], 128
    $region45: #{tpu_custom_call.1} parent=1 // pred_fallthru
      _
    // Predicated region
    $region46: #{tpu_custom_call.1} parent=1 // pred_check
      _
    $region47: #{tpu_custom_call.1} parent=1 // pred_check_branch
      %285 = sbr.rel (0) target = $region49
    $region48: #{tpu_custom_call.1} parent=1 // pred_region
      %286 = dma.done [#allocation11], 128
    $region49: #{tpu_custom_call.1} parent=1 // pred_fallthru
      _
    // Predicated region
    $region50: #{tpu_custom_call.1} parent=1 // pred_check
      _
    $region51: #{tpu_custom_call.1} parent=1 // pred_check_branch
      %288 = sbr.rel (0) target = $region53
    $region52: #{tpu_custom_call.1} parent=1 // pred_region
      %289 = dma.done [#allocation11], 128
    $region53: #{tpu_custom_call.1} parent=1 // pred_fallthru
      _
    // Predicated region
    $region54: #{tpu_custom_call.1} parent=1 // pred_check
      _
    $region55: #{tpu_custom_call.1} parent=1 // pred_check_branch
      %291 = sbr.rel (0) target = $region57
    $region56: #{tpu_custom_call.1} parent=1 // pred_region
      %292 = dma.done [#allocation14], 128
    $region57: #{tpu_custom_call.1} parent=1 // pred_fallthru
      _
    %293 = vsyncpa [#allocation7], 1
    %294 = vsyncpa [#allocation8], 1
    %295 = vsyncpa [#allocation11], 1
    %296 = vsyncpa [#allocation14], 1

</llo_original>
